<compile_context>
chip_gen: v7x
topology: tpu7x:2x2x1
jax: 0.10.0
libtpu: 0.0.40
codegen_flags: <defaults>
</compile_context>

<pallas_src>
import functools

import jax
import jax.numpy as jnp
from jax.experimental import pallas as pl
from jax.experimental.pallas import tpu as pltpu


# --------------------------- fused single-pass path ---------------------------

def _se_fused_kernel(enc_ref, w1t_ref, b1_ref, w2t_ref, b2_ref, se_ref):
    # enc_ref: (Bt, C, HW)        se_ref: (Bt, C, HW)
    # w1t_ref: (C, Csq)   b1_ref: (1, Csq)
    # w2t_ref: (Csq, C)   b2_ref: (1, C)
    x = enc_ref[...]                                                # (Bt, C, HW)
    hw = x.shape[-1]

    # Squeeze: global average pool over the spatial (lane) axis, f32 accumulate.
    pooled = jnp.sum(x.astype(jnp.float32), axis=-1) * (1.0 / hw)   # (Bt, C)

    # 1x1 conv (squeeze) + ReLU :  (Bt, C) @ (C, Csq)
    z = jnp.maximum(
        jnp.dot(pooled, w1t_ref[...], preferred_element_type=jnp.float32)
        + b1_ref[...],
        0.0,
    )                                                               # (Bt, Csq)

    # 1x1 conv (excite) + Sigmoid :  (Bt, Csq) @ (Csq, C)
    g = jax.nn.sigmoid(
        jnp.dot(z, w2t_ref[...], preferred_element_type=jnp.float32)
        + b2_ref[...]
    )                                                               # (Bt, C)

    # mode = 'mul': gate the encoder features per (batch, channel).
    se_ref[...] = (x * g[:, :, None].astype(x.dtype)).astype(se_ref.dtype)


def _se_fused(enc2, w1t, b1r, w2t, b2r, *, block_batch, budget, vmem_limit_bytes):
    B, C, HW = enc2.shape
    Csq = w1t.shape[1]
    itemsize = jnp.dtype(enc2.dtype).itemsize

    # Largest divisor of B whose double-buffered (enc-in + se-out) footprint
    # fits half the VMEM budget, preferring >= 2 grid steps (megacore).
    if block_batch is None:
        divisors = [d for d in range(1, B + 1) if B % d == 0]
        fitting = [d for d in divisors
                   if 2 * 2 * d * C * HW * itemsize <= budget] or [1]
        two_step = [d for d in fitting if B // d >= 2]
        block_batch = max(two_step) if two_step else max(fitting)
    Bt = block_batch
    assert B % Bt == 0, (B, Bt)

    return pl.pallas_call(
        _se_fused_kernel,
        out_shape=jax.ShapeDtypeStruct((B, C, HW), enc2.dtype),
        grid=(B // Bt,),
        in_specs=[
            pl.BlockSpec((Bt, C, HW), lambda b: (b, 0, 0)),
            pl.BlockSpec((C, Csq), lambda b: (0, 0)),
            pl.BlockSpec((1, Csq), lambda b: (0, 0)),
            pl.BlockSpec((Csq, C), lambda b: (0, 0)),
            pl.BlockSpec((1, C), lambda b: (0, 0)),
        ],
        out_specs=pl.BlockSpec((Bt, C, HW), lambda b: (b, 0, 0)),
        compiler_params=pltpu.CompilerParams(
            dimension_semantics=("parallel",),
            vmem_limit_bytes=vmem_limit_bytes,
        ),
    )(enc2, w1t, b1r, w2t, b2r)


# ---------------------------- two-pass HW-tiled path ---------------------------

def _pool_kernel(enc_ref, pooled_ref, acc_ref, *, inv_hw):
    # enc_ref: (Bt, C, HWt)   pooled_ref: (Bt, C)   acc_ref: (Bt, C) f32 scratch
    h = pl.program_id(1)

    @pl.when(h == 0)
    def _():
        acc_ref[...] = jnp.zeros_like(acc_ref)

    acc_ref[...] += jnp.sum(enc_ref[...].astype(jnp.float32), axis=-1)

    @pl.when(h == pl.num_programs(1) - 1)
    def _():
        pooled_ref[...] = acc_ref[...] * inv_hw


def _gate_kernel(enc_ref, g_ref, se_ref):
    # enc_ref: (Bt, C, HWt)   g_ref: (Bt, C) f32   se_ref: (Bt, C, HWt)
    x = enc_ref[...]
    g = g_ref[...]
    se_ref[...] = (x * g[:, :, None].astype(x.dtype)).astype(se_ref.dtype)


def _se_two_pass(enc2, w1t, b1r, w2t, b2r, *, block_batch, block_hw, budget,
                 vmem_limit_bytes):
    B, C, HW = enc2.shape
    itemsize = jnp.dtype(enc2.dtype).itemsize

    Bt = 1 if block_batch is None else block_batch
    assert B % Bt == 0, (B, Bt)

    # Largest multiple-of-128 divisor of HW whose double-buffered in+out tile
    # footprint fits half the VMEM budget (keeps lane reductions/stores dense).
    if block_hw is None:
        cands = [d for d in range(128, HW + 1, 128)
                 if HW % d == 0 and 2 * 2 * Bt * C * d * itemsize <= budget]
        block_hw = max(cands) if cands else HW
    HWt = block_hw
    assert HW % HWt == 0, (HW, HWt)

    nb, nhw = B // Bt, HW // HWt

    # Pass 1: spatial sums accumulated in VMEM scratch, emit pooled means.
    pooled = pl.pallas_call(
        functools.partial(_pool_kernel, inv_hw=1.0 / HW),
        out_shape=jax.ShapeDtypeStruct((nb, Bt, C), jnp.float32),
        grid=(nb, nhw),
        in_specs=[pl.BlockSpec((Bt, C, HWt), lambda b, h: (b, 0, h))],
        out_specs=pl.BlockSpec((None, Bt, C), lambda b, h: (b, 0, 0)),
        scratch_shapes=[pltpu.VMEM((Bt, C), jnp.float32)],
        compiler_params=pltpu.CompilerParams(
            dimension_semantics=("parallel", "arbitrary"),
            vmem_limit_bytes=vmem_limit_bytes,
        ),
    )(enc2)                                                   # (nb, Bt, C)

    # Tiny 1x1-conv matmuls + sigmoid: negligible compute, done in XLA.
    pooled_flat = pooled.reshape(B, C)
    z = jax.nn.relu(
        jnp.dot(pooled_flat, w1t, preferred_element_type=jnp.float32) + b1r)
    g = jax.nn.sigmoid(
        jnp.dot(z, w2t, preferred_element_type=jnp.float32) + b2r)   # (B, C) f32
    g3 = g.reshape(nb, Bt, C)

    # Pass 2: gate each enc tile by its resident per-(batch, channel) scale.
    return pl.pallas_call(
        _gate_kernel,
        out_shape=jax.ShapeDtypeStruct((B, C, HW), enc2.dtype),
        grid=(nb, nhw),
        in_specs=[
            pl.BlockSpec((Bt, C, HWt), lambda b, h: (b, 0, h)),
            pl.BlockSpec((None, Bt, C), lambda b, h: (b, 0, 0)),
        ],
        out_specs=pl.BlockSpec((Bt, C, HWt), lambda b, h: (b, 0, h)),
        compiler_params=pltpu.CompilerParams(
            dimension_semantics=("parallel", "parallel"),
            vmem_limit_bytes=vmem_limit_bytes,
        ),
    )(enc2, g3)


# ------------------------------------ wrapper ---------------------------------

def squeeze_excite(enc, dec, w1, b1, w2, b2, *, block_batch=None, block_hw=None,
                   force_two_pass=False, vmem_limit_bytes=64 * 1024 * 1024):
    """enc: (B, C, H, W), dec: (B, Cd, H, W)  -> (B, Cd + C, H, W)."""
    B, C, H, W = enc.shape
    Csq = w1.shape[0]
    HW = H * W
    itemsize = jnp.dtype(enc.dtype).itemsize
    budget = vmem_limit_bytes // 2

    # NCHW -> (B, C, H*W): channels on sublanes, spatial on lanes.
    enc2 = enc.reshape(B, C, HW)

    # Pre-transpose the 1x1-conv weights, make biases lane-dense rows.
    w1t = jnp.transpose(w1)          # (C, Csq)
    w2t = jnp.transpose(w2)          # (Csq, C)
    b1r = b1.reshape(1, Csq)
    b2r = b2.reshape(1, C)

    fused_fits = 2 * 2 * C * HW * itemsize <= budget   # Bt = 1 footprint
    if fused_fits and not force_two_pass:
        se2 = _se_fused(enc2, w1t, b1r, w2t, b2r, block_batch=block_batch,
                        budget=budget, vmem_limit_bytes=vmem_limit_bytes)
    else:
        se2 = _se_two_pass(enc2, w1t, b1r, w2t, b2r, block_batch=block_batch,
                           block_hw=block_hw, budget=budget,
                           vmem_limit_bytes=vmem_limit_bytes)

    se = se2.reshape(B, C, H, W)
    # Channel concat [dec, se] in XLA: dec carries zero compute, so it never
    # transits the kernel's VMEM pipeline and the kernel stores stay dense
    # regardless of Cd alignment.
    return jnp.concatenate([dec, se], axis=1)


def reference(enc, dec, w1, b1, w2, b2):
    pooled = jnp.mean(enc, axis=(2, 3))                       # (B, C)
    z = jax.nn.relu(pooled @ w1.T + b1[:, 0])                 # (B, Csq)
    g = jax.nn.sigmoid(z @ w2.T + b2[:, 0])                   # (B, C)
    se = enc * g[:, :, None, None]
    return jnp.concatenate([dec, se], axis=1)


if __name__ == "__main__":
    B, C, H, W = 2, 4, 16, 16
    Cd = 4                 # decoder feature channels (concatenated in front)
    Csq = C // 2           # squeeze ratio 2

    key = jax.random.PRNGKey(0)
    k_enc, k_dec, k_w1, k_b1, k_w2, k_b2 = jax.random.split(key, 6)

    enc = jax.random.normal(k_enc, (B, C, H, W), dtype=jnp.float32)
    dec = jax.random.normal(k_dec, (B, Cd, H, W), dtype=jnp.float32)

    # deterministic parameter init (1x1 conv weights/biases of the SE block)
    w1 = jax.random.normal(k_w1, (Csq, C), dtype=jnp.float32) * (1.0 / jnp.sqrt(C))
    b1 = jax.random.normal(k_b1, (Csq, 1), dtype=jnp.float32) * 0.1
    w2 = jax.random.normal(k_w2, (C, Csq), dtype=jnp.float32) * (1.0 / jnp.sqrt(Csq))
    b2 = jax.random.normal(k_b2, (C, 1), dtype=jnp.float32) * 0.1

    ref = reference(enc, dec, w1, b1, w2, b2)

    # Default (fused single-pass) path.
    out = squeeze_excite(enc, dec, w1, b1, w2, b2)
    out = jax.block_until_ready(out)
    assert out.shape == (B, Cd + C, H, W), out.shape
    assert jnp.allclose(out, ref, atol=1e-5, rtol=1e-5), float(
        jnp.max(jnp.abs(out - ref)))

    # Exercise the two-pass HW-tiled path (what runs when C*HW overflows VMEM).
    out2 = squeeze_excite(enc, dec, w1, b1, w2, b2,
                          force_two_pass=True, block_hw=128)
    out2 = jax.block_until_ready(out2)
    assert jnp.allclose(out2, ref, atol=1e-5, rtol=1e-5), float(
        jnp.max(jnp.abs(out2 - ref)))

    print("KERNEL_OK")
</pallas_src>

<mosaic_0001>
module attributes {stable_mosaic.version = 11 : i64} {
  func.func @_se_fused_kernel(%arg0: i32, %arg1: memref<1x4x256xf32, #tpu.memory_space<vmem>>, %arg2: memref<4x2xf32, #tpu.memory_space<vmem>>, %arg3: memref<1x2xf32, #tpu.memory_space<vmem>>, %arg4: memref<2x4xf32, #tpu.memory_space<vmem>>, %arg5: memref<1x4xf32, #tpu.memory_space<vmem>>, %arg6: memref<1x4x256xf32, #tpu.memory_space<vmem>>) attributes {dimension_semantics = [#tpu.dimension_semantics<parallel>], iteration_bounds = array<i64: 2>, scalar_prefetch = 0 : i64, scratch_operands = 0 : i64, tpu.core_type = #tpu.core_type<tc>, window_params = [{transform_indices = @transform_0, window_bounds = array<i64: 1, 4, 256>}, {pipeline_mode = #tpu.pipeline_mode<synchronous>, transform_indices = @transform_1, window_bounds = array<i64: 4, 2>}, {pipeline_mode = #tpu.pipeline_mode<synchronous>, transform_indices = @transform_2, window_bounds = array<i64: 1, 2>}, {pipeline_mode = #tpu.pipeline_mode<synchronous>, transform_indices = @transform_3, window_bounds = array<i64: 2, 4>}, {pipeline_mode = #tpu.pipeline_mode<synchronous>, transform_indices = @transform_4, window_bounds = array<i64: 1, 4>}, {transform_indices = @transform_5, window_bounds = array<i64: 1, 4, 256>}]} {
    %c0 = arith.constant 0 : index
    %c0_0 = arith.constant 0 : index
    %c0_1 = arith.constant 0 : index
    %0 = vector.load %arg1[%c0, %c0_0, %c0_1] : memref<1x4x256xf32, #tpu.memory_space<vmem>>, vector<1x4x256xf32>
    %cst = arith.constant dense<0.000000e+00> : vector<1x4xf32>
    %1 = vector.multi_reduction <add>, %0, %cst [2] : vector<1x4x256xf32> to vector<1x4xf32>
    %cst_2 = arith.constant 3.906250e-03 : f32
    %2 = vector.broadcast %cst_2 : f32 to vector<1x4xf32>
    %3 = arith.mulf %1, %2 : vector<1x4xf32>
    %c0_3 = arith.constant 0 : index
    %c0_4 = arith.constant 0 : index
    %4 = vector.load %arg2[%c0_3, %c0_4] : memref<4x2xf32, #tpu.memory_space<vmem>>, vector<4x2xf32>
    %cst_5 = arith.constant dense<0.000000e+00> : vector<1x2xf32>
    %5 = tpu.matmul %3, %4, %cst_5 {dimension_numbers = #tpu.dot_dimension_numbers<[1], [0], [0], [1], [0, 0, 1, 1], [], []>} : vector<1x4xf32>, vector<4x2xf32>, vector<1x2xf32> -> vector<1x2xf32>
    %c0_6 = arith.constant 0 : index
    %c0_7 = arith.constant 0 : index
    %6 = vector.load %arg3[%c0_6, %c0_7] : memref<1x2xf32, #tpu.memory_space<vmem>>, vector<1x2xf32>
    %7 = arith.addf %5, %6 : vector<1x2xf32>
    %cst_8 = arith.constant 0.000000e+00 : f32
    %8 = vector.broadcast %cst_8 : f32 to vector<1x2xf32>
    %9 = arith.maximumf %7, %8 : vector<1x2xf32>
    %c0_9 = arith.constant 0 : index
    %c0_10 = arith.constant 0 : index
    %10 = vector.load %arg4[%c0_9, %c0_10] : memref<2x4xf32, #tpu.memory_space<vmem>>, vector<2x4xf32>
    %cst_11 = arith.constant dense<0.000000e+00> : vector<1x4xf32>
    %11 = tpu.matmul %9, %10, %cst_11 {dimension_numbers = #tpu.dot_dimension_numbers<[1], [0], [0], [1], [0, 0, 1, 1], [], []>} : vector<1x2xf32>, vector<2x4xf32>, vector<1x4xf32> -> vector<1x4xf32>
    %c0_12 = arith.constant 0 : index
    %c0_13 = arith.constant 0 : index
    %12 = vector.load %arg5[%c0_12, %c0_13] : memref<1x4xf32, #tpu.memory_space<vmem>>, vector<1x4xf32>
    %13 = arith.addf %11, %12 : vector<1x4xf32>
    %14 = arith.negf %13 : vector<1x4xf32>
    %15 = math.exp %14 : vector<1x4xf32>
    %cst_14 = arith.constant 1.000000e+00 : f32
    %16 = vector.broadcast %cst_14 : f32 to vector<1x4xf32>
    %17 = arith.addf %16, %15 : vector<1x4xf32>
    %18 = arith.divf %16, %17 : vector<1x4xf32>
    %19 = vector.shape_cast %18 : vector<1x4xf32> to vector<1x4x1xf32>
    %20 = vector.broadcast %19 : vector<1x4x1xf32> to vector<1x4x256xf32>
    %21 = arith.mulf %0, %20 : vector<1x4x256xf32>
    %c0_15 = arith.constant 0 : index
    %c0_16 = arith.constant 0 : index
    %c0_17 = arith.constant 0 : index
    %22 = vector.load %arg6[%c0_15, %c0_16, %c0_17] : memref<1x4x256xf32, #tpu.memory_space<vmem>>, vector<1x4x256xf32>
    tpu.vector_store %arg6[%c0_15, %c0_16, %c0_17], %21 {strides = array<i32>} : memref<1x4x256xf32, #tpu.memory_space<vmem>>, vector<1x4x256xf32>,
    return
  }
  func.func @transform_0(%arg0: i32) -> (i32, i32, i32) {
    %c0_i32 = arith.constant 0 : i32
    %c0_i32_0 = arith.constant 0 : i32
    %c0_i32_1 = arith.constant 0 : i32
    return %arg0, %c0_i32, %c0_i32_0 : i32, i32, i32
  }
  func.func @transform_1(%arg0: i32) -> (i32, i32) {
    %c0_i32 = arith.constant 0 : i32
    %c0_i32_0 = arith.constant 0 : i32
    %c0_i32_1 = arith.constant 0 : i32
    return %c0_i32, %c0_i32_0 : i32, i32
  }
  func.func @transform_2(%arg0: i32) -> (i32, i32) {
    %c0_i32 = arith.constant 0 : i32
    %c0_i32_0 = arith.constant 0 : i32
    %c0_i32_1 = arith.constant 0 : i32
    return %c0_i32, %c0_i32_0 : i32, i32
  }
  func.func @transform_3(%arg0: i32) -> (i32, i32) {
    %c0_i32 = arith.constant 0 : i32
    %c0_i32_0 = arith.constant 0 : i32
    %c0_i32_1 = arith.constant 0 : i32
    return %c0_i32, %c0_i32_0 : i32, i32
  }
  func.func @transform_4(%arg0: i32) -> (i32, i32) {
    %c0_i32 = arith.constant 0 : i32
    %c0_i32_0 = arith.constant 0 : i32
    %c0_i32_1 = arith.constant 0 : i32
    return %c0_i32, %c0_i32_0 : i32, i32
  }
  func.func @transform_5(%arg0: i32) -> (i32, i32, i32) {
    %c0_i32 = arith.constant 0 : i32
    %c0_i32_0 = arith.constant 0 : i32
    %c0_i32_1 = arith.constant 0 : i32
    return %arg0, %c0_i32, %c0_i32_0 : i32, i32, i32
  }
}

</mosaic_0001>

<llo_original>
// kernel: tpu_custom_call.1
$region0: #{tpu_custom_call.1}
  #allocation0 [shape = 'u32[]', space=smem, size = 0x4, offset = 0x4, fixed_abs, tag = 'smem constant byte address 0x4 - core index']
  #allocation1 [shape = 'u32[144,128]{1,0:T(1,128)}', space=vmem, size = 0x12000, scoped, tag = 'internal scratch']
  %s0 = inlined_call_operand.hbm [shape: f32[2,4,256], index: 0, kind: input, shape index: {}]
  %s1 = inlined_call_operand.hbm [shape: f32[4,2], index: 1, kind: input, shape index: {}]
  %s2 = inlined_call_operand.hbm [shape: f32[1,2], index: 2, kind: input, shape index: {}]
  %s3 = inlined_call_operand.hbm [shape: f32[2,4], index: 3, kind: input, shape index: {}]
  %s4 = inlined_call_operand.hbm [shape: f32[1,4], index: 4, kind: input, shape index: {}]
  %s5 = inlined_call_operand.hbm [shape: f32[2,4,256], index: 5, kind: output, shape index: {}]
  %s6 = sld [smem:[#allocation0]]
  $region73: #{tpu_custom_call.1} parent=0
    _
  %s8 = ssub.s32 1, %s6
  %s9 = scalar_select 0, %s8, %s6
  $region1: #{tpu_custom_call.1} parent=0
    #allocation2 [shape = 'u8[8192]{0}', space=vmem, size = 0x2000, scoped, tag = 'input window, operand 0']
    #allocation3 [shape = 's32[2]{0}', space=sflag, size = 0x8, scoped, tag = 'scoped memory for tpu_custom_call.1']
    #allocation4 [shape = 's32[2]{0}', space=sflag, size = 0x8, scoped, tag = 'scoped memory for tpu_custom_call.1']
    #allocation5 [shape = 'u8[2048]{0}', space=vmem, size = 0x800, scoped, tag = 'input window, operand 1, single buffered']
    #allocation6 [shape = 's32[1]{0}', space=sflag, size = 0x4, scoped, tag = 'scoped memory for tpu_custom_call.1']
    #allocation7 [shape = 'u8[512]{0}', space=vmem, size = 0x400, scoped, tag = 'input window, operand 2, single buffered']
    #allocation8 [shape = 'u8[1024]{0}', space=vmem, size = 0x400, scoped, tag = 'input window, operand 3, single buffered']
    #allocation9 [shape = 's32[1]{0}', space=sflag, size = 0x4, scoped, tag = 'scoped memory for tpu_custom_call.1']
    #allocation10 [shape = 'u8[512]{0}', space=vmem, size = 0x400, scoped, tag = 'input window, operand 4, single buffered']
    #allocation11 [shape = 'u8[8192]{0}', space=vmem, size = 0x2000, scoped, tag = 'output window, operand 0']
    %10 = vsyncpa [#allocation3], 0
    %s11 = scalar_lea.sflag [#allocation3], 1
    %12 = vsyncpa %s11, 0
    %13 = vsyncpa [#allocation6], 0
    %14 = vsyncpa [#allocation9], 0
    %15 = vsyncpa [#allocation4], 0
    %s16 = scalar_lea.sflag [#allocation4], 1
    %17 = vsyncpa %s16, 0
    loop: start=0, step=1, limit=4
    $region2: #{tpu_custom_call.1} parent=1 // loop_pre_header
      _
    $region3: #{tpu_custom_call.1} parent=1 // loop_header
      %s19 = sphi 0, %s23
      %p20 = scmp.ge.s32.totalorder %s19, 4
      %s29 = sphi 0, %s31
      %s32 = sphi 0, %s29
      %s33 = sphi 0, %s32
      %s49 = sphi 0, %s33
      %s53 = sphi 0, %s53
      %s55 = sphi 0, %s53
      %s56 = sphi 0, %s55
      %s70 = sphi 0, %s56
      %s74 = sphi 0, %s74
      %s76 = sphi 0, %s74
      %s77 = sphi 0, %s76
      %s91 = sphi 0, %s77
      %s95 = sphi 0, %s95
      %s97 = sphi 0, %s95
      %s98 = sphi 0, %s97
      %s112 = sphi 0, %s98
      %s116 = sphi 0, %s116
      %s118 = sphi 0, %s116
      %s119 = sphi 0, %s118
      %s133 = sphi 0, %s119
      %s139 = sphi 0, %s141
      %s142 = sphi 0, %s139
      %s143 = sphi 0, %s142
      %s159 = sphi 0, %s143
    $region4: #{tpu_custom_call.1} parent=1 // loop_header_branch
      %22 = sbr.rel (%p20) target = $region8
    $region5: #{tpu_custom_call.1} parent=1 // loop_body
      %s24 = ssub.s32 %s19, 1
      %s25 = ssub.s32 %s19, 2
      %s26 = sadd.s32 %s19, 1
      %s27 = ssub.s32 %s19, %s26
      %p28 = scmp.eq.s32.totalorder %s27, 0
      %s30 = sadd.s32 %s29, 1
      %s31 = scalar_select %p28, %s29, %s30
      %p34 = pneg %p28
      %p35 = scmp.eq.s32.totalorder %s19, 1
      %p36 = por %p34, %p35
      %p37 = scmp.ne.s32.totalorder %s29, %s32
      %p38 = scmp.eq.s32.totalorder %s19, 0
      %p39 = por %p37, %p38
      %p40 = scmp.ne.s32.totalorder %s29, %s32
      %p41 = scmp.eq.s32.totalorder %s24, 1
      %p42 = por %p40, %p41
      %p43 = scmp.ne.s32.totalorder %s32, %s33
      %p44 = scmp.eq.s32.totalorder %s24, 0
      %p45 = por %p43, %p44
      %p46 = scmp.ne.s32.totalorder %s32, %s33
      %p47 = scmp.eq.s32.totalorder %s25, 1
      %p48 = por %p46, %p47
      %p50 = scmp.ne.s32.totalorder %s33, %s49
      %p51 = scmp.eq.s32.totalorder %s25, 0
      %p52 = por %p50, %p51
      %s54 = sadd.s32 %s53, 1
      %p57 = scmp.eq.s32.totalorder %s19, 1
      %p58 = scmp.ne.s32.totalorder %s53, %s55
      %p59 = scmp.eq.s32.totalorder %s19, 0
      %p60 = por %p58, %p59
      %p61 = scmp.ne.s32.totalorder %s53, %s55
      %p62 = scmp.eq.s32.totalorder %s24, 1
      %p63 = por %p61, %p62
      %p64 = scmp.ne.s32.totalorder %s55, %s56
      %p65 = scmp.eq.s32.totalorder %s24, 0
      %p66 = por %p64, %p65
      %p67 = scmp.ne.s32.totalorder %s55, %s56
      %p68 = scmp.eq.s32.totalorder %s25, 1
      %p69 = por %p67, %p68
      %p71 = scmp.ne.s32.totalorder %s56, %s70
      %p72 = scmp.eq.s32.totalorder %s25, 0
      %p73 = por %p71, %p72
      %s75 = sadd.s32 %s74, 1
      %p78 = scmp.eq.s32.totalorder %s19, 1
      %p79 = scmp.ne.s32.totalorder %s74, %s76
      %p80 = scmp.eq.s32.totalorder %s19, 0
      %p81 = por %p79, %p80
      %p82 = scmp.ne.s32.totalorder %s74, %s76
      %p83 = scmp.eq.s32.totalorder %s24, 1
      %p84 = por %p82, %p83
      %p85 = scmp.ne.s32.totalorder %s76, %s77
      %p86 = scmp.eq.s32.totalorder %s24, 0
      %p87 = por %p85, %p86
      %p88 = scmp.ne.s32.totalorder %s76, %s77
      %p89 = scmp.eq.s32.totalorder %s25, 1
      %p90 = por %p88, %p89
      %p92 = scmp.ne.s32.totalorder %s77, %s91
      %p93 = scmp.eq.s32.totalorder %s25, 0
      %p94 = por %p92, %p93
      %s96 = sadd.s32 %s95, 1
      %p99 = scmp.eq.s32.totalorder %s19, 1
      %p100 = scmp.ne.s32.totalorder %s95, %s97
      %p101 = scmp.eq.s32.totalorder %s19, 0
      %p102 = por %p100, %p101
      %p103 = scmp.ne.s32.totalorder %s95, %s97
      %p104 = scmp.eq.s32.totalorder %s24, 1
      %p105 = por %p103, %p104
      %p106 = scmp.ne.s32.totalorder %s97, %s98
      %p107 = scmp.eq.s32.totalorder %s24, 0
      %p108 = por %p106, %p107
      %p109 = scmp.ne.s32.totalorder %s97, %s98
      %p110 = scmp.eq.s32.totalorder %s25, 1
      %p111 = por %p109, %p110
      %p113 = scmp.ne.s32.totalorder %s98, %s112
      %p114 = scmp.eq.s32.totalorder %s25, 0
      %p115 = por %p113, %p114
      %s117 = sadd.s32 %s116, 1
      %p120 = scmp.eq.s32.totalorder %s19, 1
      %p121 = scmp.ne.s32.totalorder %s116, %s118
      %p122 = scmp.eq.s32.totalorder %s19, 0
      %p123 = por %p121, %p122
      %p124 = scmp.ne.s32.totalorder %s116, %s118
      %p125 = scmp.eq.s32.totalorder %s24, 1
      %p126 = por %p124, %p125
      %p127 = scmp.ne.s32.totalorder %s118, %s119
      %p128 = scmp.eq.s32.totalorder %s24, 0
      %p129 = por %p127, %p128
      %p130 = scmp.ne.s32.totalorder %s118, %s119
      %p131 = scmp.eq.s32.totalorder %s25, 1
      %p132 = por %p130, %p131
      %p134 = scmp.ne.s32.totalorder %s119, %s133
      %p135 = scmp.eq.s32.totalorder %s25, 0
      %p136 = por %p134, %p135
      %s137 = ssub.s32 %s19, %s26
      %p138 = scmp.eq.s32.totalorder %s137, 0
      %s140 = sadd.s32 %s139, 1
      %s141 = scalar_select %p138, %s139, %s140
      %p144 = pneg %p138
      %p145 = scmp.eq.s32.totalorder %s19, 1
      %p146 = por %p144, %p145
      %p147 = scmp.ne.s32.totalorder %s139, %s142
      %p148 = scmp.eq.s32.totalorder %s19, 0
      %p149 = por %p147, %p148
      %p150 = scmp.ne.s32.totalorder %s139, %s142
      %p151 = scmp.eq.s32.totalorder %s24, 1
      %p152 = por %p150, %p151
      %p153 = scmp.ne.s32.totalorder %s142, %s143
      %p154 = scmp.eq.s32.totalorder %s24, 0
      %p155 = por %p153, %p154
      %p156 = scmp.ne.s32.totalorder %s142, %s143
      %p157 = scmp.eq.s32.totalorder %s25, 1
      %p158 = por %p156, %p157
      %p160 = scmp.ne.s32.totalorder %s143, %s159
      %p161 = scmp.eq.s32.totalorder %s25, 0
      %p162 = por %p160, %p161
      %p163 = scmp.le.s32.totalorder 1, %s19
      %p164 = scmp.lt.s32.totalorder %s19, 3
      %p165 = pnand %p163, %p164
      %p166 = pneg %p165
      // Predicated region
      $region9: #{tpu_custom_call.1} parent=5 // pred_check
        _
      $region10: #{tpu_custom_call.1} parent=5 // pred_check_branch
        %168 = sbr.rel (%p165) target = $region12
      $region11: #{tpu_custom_call.1} parent=5 // pred_region
        %s169 = ssub.s32 %s19, 1
        // Predicated region
        $region13: #{tpu_custom_call.1} parent=11 // pred_check
          %p170 = pneg %p66
        $region14: #{tpu_custom_call.1} parent=11 // pred_check_branch
          %172 = sbr.rel (%p170) target = $region16
        $region15: #{tpu_custom_call.1} parent=11 // pred_region
          %s174 = ssub.s32 64, 64
          %175 = vsyncadd [#allocation6], %s174
          %s177 = sshll.u32 [#allocation5], 4
          %s178 = int_to_ptr.vmem [resolvable:$true] %s177
          %180 = dma.hbm_to_vmem [thread:$0]  %s1, 64, %s178, [#allocation6]
        $region16: #{tpu_custom_call.1} parent=11 // pred_fallthru
          _
        // Predicated region
        $region17: #{tpu_custom_call.1} parent=11 // pred_check
          %p181 = pneg %p87
        $region18: #{tpu_custom_call.1} parent=11 // pred_check_branch
          %183 = sbr.rel (%p181) target = $region20
        $region19: #{tpu_custom_call.1} parent=11 // pred_region
          %s185 = ssub.s32 16, 16
          %186 = vsyncadd [#allocation6], %s185
          %s188 = sshll.u32 [#allocation7], 4
          %s189 = int_to_ptr.vmem [resolvable:$true] %s188
          %191 = dma.hbm_to_vmem [thread:$0]  %s2, 16, %s189, [#allocation6]
        $region20: #{tpu_custom_call.1} parent=11 // pred_fallthru
          _
        // Predicated region
        $region21: #{tpu_custom_call.1} parent=11 // pred_check
          %p192 = pneg %p108
        $region22: #{tpu_custom_call.1} parent=11 // pred_check_branch
          %194 = sbr.rel (%p192) target = $region24
        $region23: #{tpu_custom_call.1} parent=11 // pred_region
          %s196 = ssub.s32 32, 32
          %197 = vsyncadd [#allocation9], %s196
          %s199 = sshll.u32 [#allocation8], 4
          %s200 = int_to_ptr.vmem [resolvable:$true] %s199
          %202 = dma.hbm_to_vmem [thread:$0]  %s3, 32, %s200, [#allocation9]
        $region24: #{tpu_custom_call.1} parent=11 // pred_fallthru
          _
        // Predicated region
        $region25: #{tpu_custom_call.1} parent=11 // pred_check
          %p203 = pneg %p129
        $region26: #{tpu_custom_call.1} parent=11 // pred_check_branch
          %205 = sbr.rel (%p203) target = $region28
        $region27: #{tpu_custom_call.1} parent=11 // pred_region
          %s207 = ssub.s32 16, 16
          %208 = vsyncadd [#allocation9], %s207
          %s210 = sshll.u32 [#allocation10], 4
          %s211 = int_to_ptr.vmem [resolvable:$true] %s210
          %213 = dma.hbm_to_vmem [thread:$0]  %s4, 16, %s211, [#allocation9]
        $region28: #{tpu_custom_call.1} parent=11 // pred_fallthru
          _
      $region12: #{tpu_custom_call.1} parent=5 // pred_fallthru
        _
      %p214 = scmp.lt.s32.totalorder %s19, 2
      // Predicated region
      $region29: #{tpu_custom_call.1} parent=5 // pred_check
        %p215 = pneg %p214
      $region30: #{tpu_custom_call.1} parent=5 // pred_check_branch
        %217 = sbr.rel (%p215) target = $region32
      $region31: #{tpu_custom_call.1} parent=5 // pred_region
        // Predicated region
        $region33: #{tpu_custom_call.1} parent=31 // pred_check
          %p218 = pneg %p39
        $region34: #{tpu_custom_call.1} parent=31 // pred_check_branch
          %220 = sbr.rel (%p218) target = $region36
        $region35: #{tpu_custom_call.1} parent=31 // pred_region
          %s221 = sand.u32 %s29, 1
          %s222 = scalar_lea.sflag [#allocation3], %s221
          %s223 = sand.u32 %s29, 1
          %s224 = smul.addr %s223, 8
          %s225 = scalar_lea.vmem [#allocation2], %s224
          %s227 = ssub.s32 128, 128
          %228 = vsyncadd %s222, %s227
          %s229 = smul.addr %s19, 2
          %s230 = smul.addr %s229, 64
          %s231 = scalar_lea.hbm %s0, %s230
          %s233 = sshll.u32 %s225, 4
          %s234 = int_to_ptr.vmem [resolvable:$true] %s233
          %236 = dma.hbm_to_vmem [thread:$0]  %s231, 128, %s234, %s222
        $region36: #{tpu_custom_call.1} parent=31 // pred_fallthru
          _
      $region32: #{tpu_custom_call.1} parent=5 // pred_fallthru
        _
      %p237 = scmp.le.s32.totalorder 1, %s19
      %p238 = scmp.lt.s32.totalorder %s19, 3
      %p239 = pnand %p237, %p238
      %p240 = pneg %p239
      // Predicated region
      $region37: #{tpu_custom_call.1} parent=5 // pred_check
        _
      $region38: #{tpu_custom_call.1} parent=5 // pred_check_branch
        %242 = sbr.rel (%p239) target = $region40
      $region39: #{tpu_custom_call.1} parent=5 // pred_region
        %s243 = ssub.s32 %s19, 1
        %s244 = sand.u32 %s32, 1
        %s245 = scalar_lea.sflag [#allocation3], %s244
        %s246 = sand.u32 %s32, 1
        %s247 = smul.addr %s246, 8
        %s248 = scalar_lea.vmem [#allocation2], %s247
        // Predicated region
        $region41: #{tpu_custom_call.1} parent=39 // pred_check
          %p249 = pneg %p45
        $region42: #{tpu_custom_call.1} parent=39 // pred_check_branch
          %251 = sbr.rel (%p249) target = $region44
        $region43: #{tpu_custom_call.1} parent=39 // pred_region
          %252 = dma.done %s245, 128
        $region44: #{tpu_custom_call.1} parent=39 // pred_fallthru
          _
        // Predicated region
        $region45: #{tpu_custom_call.1} parent=39 // pred_check
          %p253 = pneg %p66
        $region46: #{tpu_custom_call.1} parent=39 // pred_check_branch
          %255 = sbr.rel (%p253) target = $region48
        $region47: #{tpu_custom_call.1} parent=39 // pred_region
          %256 = dma.done [#allocation6], 64
        $region48: #{tpu_custom_call.1} parent=39 // pred_fallthru
          _
        // Predicated region
        $region49: #{tpu_custom_call.1} parent=39 // pred_check
          %p257 = pneg %p87
        $region50: #{tpu_custom_call.1} parent=39 // pred_check_branch
          %259 = sbr.rel (%p257) target = $region52
        $region51: #{tpu_custom_call.1} parent=39 // pred_region
          %260 = dma.done [#allocation6], 16
        $region52: #{tpu_custom_call.1} parent=39 // pred_fallthru
          _
        // Predicated region
        $region53: #{tpu_custom_call.1} parent=39 // pred_check
          %p261 = pneg %p108
        $region54: #{tpu_custom_call.1} parent=39 // pred_check_branch
          %263 = sbr.rel (%p261) target = $region56
        $region55: #{tpu_custom_call.1} parent=39 // pred_region
          %264 = dma.done [#allocation9], 32
        $region56: #{tpu_custom_call.1} parent=39 // pred_fallthru
          _
        // Predicated region
        $region57: #{tpu_custom_call.1} parent=39 // pred_check
          %p265 = pneg %p129
        $region58: #{tpu_custom_call.1} parent=39 // pred_check_branch
          %267 = sbr.rel (%p265) target = $region60
        $region59: #{tpu_custom_call.1} parent=39 // pred_region
          %268 = dma.done [#allocation9], 16
        $region60: #{tpu_custom_call.1} parent=39 // pred_fallthru
          _
        %s269 = sand.u32 %s32, 1
        %s270 = scalar_lea.sflag [#allocation3], %s269
        %s271 = sand.u32 %s32, 1
        %s272 = smul.addr %s271, 8
        %s273 = scalar_lea.vmem [#allocation2], %s272
        %p274 = pneg %p45
        %p275 = pneg %p42
        %p276 = pneg %p66
        %p277 = pneg %p63
        %p278 = pneg %p87
        %p279 = pneg %p84
        %p280 = pneg %p108
        %p281 = pneg %p105
        %p282 = pneg %p129
        %p283 = pneg %p126
        %p284 = pneg %p155
        %p285 = pneg %p152
        %s286 = sand.u32 %s142, 1
        %s287 = scalar_lea.sflag [#allocation4], %s286
        %s288 = sand.u32 %s142, 1
        %s289 = smul.addr %s288, 8
        %s290 = scalar_lea.vmem [#allocation11], %s289
        %v291 = vld [vmem:[%s248] sm:$0xff]
        %v293 = vcombine.high %v291, %v291
        %vm295 = vcmask 1043456
        %v296 = vsel %vm295, %v291, 0.0
        %v297 = vsel %vm295, %v293, 0.0
        %v298 = vadd.f32 %v296, %v297
        %299 = vadd.xlane.f32.xlu0 %v298
        %v300 = vpop.xlane.xlu0 %299
        %v301 = vmul.f32 %v300, 0.00390625
        %v302 = vld [vmem:[#allocation5] sm:$0xf]
        %v303 = vld [vmem:[#allocation7] sm:$0x1]
        %v305 = vlaneseq
        %v306 = vand.u32 %v305, 127
        %v307 = vlaneseq
        %v308 = vshrl.u32 %v307, 7
        %v309 = vsub.s32 %v306, %v308
        %v310 = vrot.slane %v301, %v309
        %vm311 = vcmask 31744
        %v312 = vsel %vm311, %v310, 0
        %v315 = vsel %vm295, %v302, 0
        %317 = vmatprep.subr.mxu0 0.0
        %318 = vmatpush1.msra.mxu0 %v315
        %319 = vmatprep.subr.mxu0 0.0
        %320 = vmatpush1.msra.mxu0 0.0
        %321 = vmatprep.subr.mxu0 0.0
        %322 = vmatpush1.msra.mxu0 0.0
        %323 = vmatprep.subr.mxu0 0.0
        %324 = vmatpush1.msra.mxu0 0.0
        %325 = vmatprep.subr.mxu0 0.0
        %326 = vmatpush1.msra.mxu0 0.0
        %327 = vmatprep.subr.mxu0 0.0
        %328 = vmatpush1.msra.mxu0 0.0
        %329 = vmatprep.subr.mxu0 0.0
        %330 = vmatpush1.msra.mxu0 0.0
        %331 = vmatprep.subr.mxu0 0.0
        %332 = vmatpush1.msra.mxu0 0.0
        %333 = vmatprep.subr.mxu0 0.0
        %334 = vmatpush1.msra.mxu0 0.0
        %335 = vmatprep.subr.mxu0 0.0
        %336 = vmatpush1.msra.mxu0 0.0
        %337 = vmatprep.subr.mxu0 0.0
        %338 = vmatpush1.msra.mxu0 0.0
        %339 = vmatprep.subr.mxu0 0.0
        %340 = vmatpush1.msra.mxu0 0.0
        %341 = vmatprep.subr.mxu0 0.0
        %342 = vmatpush1.msra.mxu0 0.0
        %343 = vmatprep.subr.mxu0 0.0
        %344 = vmatpush1.msra.mxu0 0.0
        %345 = vmatprep.subr.mxu0 0.0
        %346 = vmatpush1.msra.mxu0 0.0
        %347 = vmatprep.subr.mxu0 0.0
        %348 = vmatpush1.msra.mxu0 0.0
        %349 = vmatprep.subr.mxu0 0.0
        %350 = vmatpush1.msra.mxu0 0.0
        %351 = vmatprep.subr.mxu0 0.0
        %352 = vmatpush1.msra.mxu0 0.0
        %353 = vmatprep.subr.mxu0 0.0
        %354 = vmatpush1.msra.mxu0 0.0
        %355 = vmatprep.subr.mxu0 0.0
        %356 = vmatpush1.msra.mxu0 0.0
        %357 = vmatprep.subr.mxu0 0.0
        %358 = vmatpush1.msra.mxu0 0.0
        %359 = vmatprep.subr.mxu0 0.0
        %360 = vmatpush1.msra.mxu0 0.0
        %361 = vmatprep.subr.mxu0 0.0
        %362 = vmatpush1.msra.mxu0 0.0
        %363 = vmatprep.subr.mxu0 0.0
        %364 = vmatpush1.msra.mxu0 0.0
        %365 = vmatprep.subr.mxu0 0.0
        %366 = vmatpush1.msra.mxu0 0.0
        %367 = vmatprep.subr.mxu0 0.0
        %368 = vmatpush1.msra.mxu0 0.0
        %369 = vmatprep.subr.mxu0 0.0
        %370 = vmatpush1.msra.mxu0 0.0
        %371 = vmatprep.subr.mxu0 0.0
        %372 = vmatpush1.msra.mxu0 0.0
        %373 = vmatprep.subr.mxu0 0.0
        %374 = vmatpush1.msra.mxu0 0.0
        %375 = vmatprep.subr.mxu0 0.0
        %376 = vmatpush1.msra.mxu0 0.0
        %377 = vmatprep.subr.mxu0 0.0
        %378 = vmatpush1.msra.mxu0 0.0
        %379 = vmatprep.subr.mxu0 0.0
        %380 = vmatpush1.msra.mxu0 0.0
        %381 = vmatprep.mubr.f32.mxu0 0.0
        %382 = vmatmul.mubr.f32.gmra.mrb[0].mxu0 %v312
        %v383 = vpop.f32.mrb[0].mxu0
        %v384 = vadd.f32 %v303, %v383
        %v385 = vpop.f32.mrb[0].mxu0
        %386 = vdwg.mxu0
        %v387 = vmax.f32 %v384, 0.0
        %v388 = vld [vmem:[#allocation8] sm:$0x3]
        %v389 = vld [vmem:[#allocation10] sm:$0x1]
        %vm390 = vcmask 15360
        %v392 = vsel %vm390, %v387, 0
        %vm394 = vcmask 1041408
        %v396 = vsel %vm394, %v388, 0
        %398 = vmatprep.subr.mxu0 0.0
        %399 = vmatpush1.msra.mxu0 %v396
        %400 = vmatprep.subr.mxu0 0.0
        %401 = vmatpush1.msra.mxu0 0.0
        %402 = vmatprep.subr.mxu0 0.0
        %403 = vmatpush1.msra.mxu0 0.0
        %404 = vmatprep.subr.mxu0 0.0
        %405 = vmatpush1.msra.mxu0 0.0
        %406 = vmatprep.subr.mxu0 0.0
        %407 = vmatpush1.msra.mxu0 0.0
        %408 = vmatprep.subr.mxu0 0.0
        %409 = vmatpush1.msra.mxu0 0.0
        %410 = vmatprep.subr.mxu0 0.0
        %411 = vmatpush1.msra.mxu0 0.0
        %412 = vmatprep.subr.mxu0 0.0
        %413 = vmatpush1.msra.mxu0 0.0
        %414 = vmatprep.subr.mxu0 0.0
        %415 = vmatpush1.msra.mxu0 0.0
        %416 = vmatprep.subr.mxu0 0.0
        %417 = vmatpush1.msra.mxu0 0.0
        %418 = vmatprep.subr.mxu0 0.0
        %419 = vmatpush1.msra.mxu0 0.0
        %420 = vmatprep.subr.mxu0 0.0
        %421 = vmatpush1.msra.mxu0 0.0
        %422 = vmatprep.subr.mxu0 0.0
        %423 = vmatpush1.msra.mxu0 0.0
        %424 = vmatprep.subr.mxu0 0.0
        %425 = vmatpush1.msra.mxu0 0.0
        %426 = vmatprep.subr.mxu0 0.0
        %427 = vmatpush1.msra.mxu0 0.0
        %428 = vmatprep.subr.mxu0 0.0
        %429 = vmatpush1.msra.mxu0 0.0
        %430 = vmatprep.subr.mxu0 0.0
        %431 = vmatpush1.msra.mxu0 0.0
        %432 = vmatprep.subr.mxu0 0.0
        %433 = vmatpush1.msra.mxu0 0.0
        %434 = vmatprep.subr.mxu0 0.0
        %435 = vmatpush1.msra.mxu0 0.0
        %436 = vmatprep.subr.mxu0 0.0
        %437 = vmatpush1.msra.mxu0 0.0
        %438 = vmatprep.subr.mxu0 0.0
        %439 = vmatpush1.msra.mxu0 0.0
        %440 = vmatprep.subr.mxu0 0.0
        %441 = vmatpush1.msra.mxu0 0.0
        %442 = vmatprep.subr.mxu0 0.0
        %443 = vmatpush1.msra.mxu0 0.0
        %444 = vmatprep.subr.mxu0 0.0
        %445 = vmatpush1.msra.mxu0 0.0
        %446 = vmatprep.subr.mxu0 0.0
        %447 = vmatpush1.msra.mxu0 0.0
        %448 = vmatprep.subr.mxu0 0.0
        %449 = vmatpush1.msra.mxu0 0.0
        %450 = vmatprep.subr.mxu0 0.0
        %451 = vmatpush1.msra.mxu0 0.0
        %452 = vmatprep.subr.mxu0 0.0
        %453 = vmatpush1.msra.mxu0 0.0
        %454 = vmatprep.subr.mxu0 0.0
        %455 = vmatpush1.msra.mxu0 0.0
        %456 = vmatprep.subr.mxu0 0.0
        %457 = vmatpush1.msra.mxu0 0.0
        %458 = vmatprep.subr.mxu0 0.0
        %459 = vmatpush1.msra.mxu0 0.0
        %460 = vmatprep.subr.mxu0 0.0
        %461 = vmatpush1.msra.mxu0 0.0
        %462 = vmatprep.mubr.f32.mxu0 0.0
        %463 = vmatmul.mubr.f32.gmra.mrb[0].mxu0 %v392
        %v464 = vpop.f32.mrb[0].mxu0
        %v465 = vadd.f32 %v389, %v464
        %v466 = vpop.f32.mrb[0].mxu0
        %467 = vdwg.mxu0
        %v468 = vxor.u32 %v465, 2147483648
        %v469 = vmul.f32 %v468, 1.442695
        %v470 = vpow.pop %v469
        %v471 = vadd.f32 %v470, 1.0
        %v472 = vrcp.pop %v471
        %v473 = vmul.f32 1.0, %v472
        %v474 = vlaneseq
        %v475 = vshrl.u32 %v474, 7
        %v476 = vsub.s32 0, %v475
        %v477 = vrot.slane %v473, %v476
        %479 = vbcast.lane.b32.xlu0 %v477, 256
        %v480 = vpop.permute.xlu0 %479
        %v483 = vunpack.c.l.s4 839922192
        %v484 = vunpack.c.0.s8 %v483
        %v485 = vlaneseq
        %v486 = vshrl.u32 %v485, 7
        %v487 = vsub.s32 %v484, %v486
        %v488 = vrot.slane %v480, %v487
        %v490 = vmul.f32 %v291, %v488
        %491 = vst [vmem:[%s290] sm:$0xff] %v490
        %s492 = sand.u32 %s142, 1
        %s493 = scalar_lea.sflag [#allocation4], %s492
        %s494 = sand.u32 %s142, 1
        %s495 = smul.addr %s494, 8
        %s496 = scalar_lea.vmem [#allocation11], %s495
        // Predicated region
        $region61: #{tpu_custom_call.1} parent=39 // pred_check
          %p497 = pneg %p152
        $region62: #{tpu_custom_call.1} parent=39 // pred_check_branch
          %499 = sbr.rel (%p497) target = $region64
        $region63: #{tpu_custom_call.1} parent=39 // pred_region
          %s501 = ssub.s32 128, 128
          %502 = vsyncadd %s493, %s501
          %s503 = smul.addr %s24, 2
          %s504 = smul.addr %s503, 64
          %s505 = scalar_lea.hbm %s5, %s504
          %s507 = sshll.u32 %s496, 4
          %s508 = int_to_ptr.vmem [resolvable:$true] %s507
          %510 = dma.vmem_to_hbm [thread:$0]  %s508, 128, %s505, %s493
        $region64: #{tpu_custom_call.1} parent=39 // pred_fallthru
          _
      $region40: #{tpu_custom_call.1} parent=5 // pred_fallthru
        _
      %p511 = scmp.le.s32.totalorder 2, %s19
      // Predicated region
      $region65: #{tpu_custom_call.1} parent=5 // pred_check
        %p512 = pneg %p511
      $region66: #{tpu_custom_call.1} parent=5 // pred_check_branch
        %514 = sbr.rel (%p512) target = $region68
      $region67: #{tpu_custom_call.1} parent=5 // pred_region
        %s515 = ssub.s32 %s19, 2
        // Predicated region
        $region69: #{tpu_custom_call.1} parent=67 // pred_check
          %p516 = pneg %p158
        $region70: #{tpu_custom_call.1} parent=67 // pred_check_branch
          %518 = sbr.rel (%p516) target = $region72
        $region71: #{tpu_custom_call.1} parent=67 // pred_region
          %s519 = sand.u32 %s143, 1
          %s520 = scalar_lea.sflag [#allocation4], %s519
          %s521 = sand.u32 %s143, 1
          %s522 = smul.addr %s521, 8
          %s523 = scalar_lea.vmem [#allocation11], %s522
          %524 = dma.done %s520, 128
        $region72: #{tpu_custom_call.1} parent=67 // pred_fallthru
          _
      $region68: #{tpu_custom_call.1} parent=5 // pred_fallthru
        _
    $region6: #{tpu_custom_call.1} parent=1 // loop_footer
      %s23 = sadd.s32 1, %s19
    $region7: #{tpu_custom_call.1} parent=1 // loop_footer_branch
      %18 = sbr.rel target = $region3
    $region8: #{tpu_custom_call.1} parent=1 // loop_exit
      _
    %525 = vsyncpa [#allocation3], 1
    %s526 = scalar_lea.sflag [#allocation3], 1
    %527 = vsyncpa %s526, 1
    %528 = vsyncpa [#allocation6], 1
    %529 = vsyncpa [#allocation9], 1
    %530 = vsyncpa [#allocation4], 1
    %s531 = scalar_lea.sflag [#allocation4], 1
    %532 = vsyncpa %s531, 1

</llo_original>
